<compile_context>
chip_gen: v7x
topology: tpu7x:2x2x1
jax: 0.10.0
libtpu: 0.0.40
codegen_flags: <defaults>
</compile_context>

<pallas_src>
import jax
import jax.numpy as jnp
from jax.experimental import pallas as pl
from jax.experimental.pallas import tpu as pltpu

_CONST = 1e-8
_LANE = 128
_SUB = 8


def _silu_xai_kernel(x_ref, o_ref):
    x = x_ref[...].astype(jnp.float32)
    # x * (silu(x) / (x + c)) == x*x / ((1 + exp(-x)) * (x + c))  (one division)
    denom = (1.0 + jnp.exp(-x)) * (x + _CONST)
    out = (x * x) / denom
    # TODO(synk): PyTorch gates nan_to_num on whole-tensor `not isinf().any() and
    # isnan().any()` and drops into pdb on inf; here NaNs are zeroed elementwise
    # and infs pass through unchanged (debug-only branch, no kernel equivalent).
    out = jnp.where(jnp.isnan(out), 0.0, out)
    o_ref[...] = out.astype(o_ref.dtype)


def silu_xai(x: jax.Array, *, tile_rows: int = 2048) -> jax.Array:
    """Elementwise SiLUXAI forward; works for any input shape/float dtype."""
    orig_shape = x.shape
    dtype = x.dtype

    flat = x.reshape(-1)                      # keep original dtype (no f32 pass)
    n = flat.shape[0]

    chunk = _LANE * _SUB                      # 1024 elements -> (8, 128) slab unit
    padded = pl.cdiv(n, chunk) * chunk
    if padded != n:                           # pad only the small tail when needed
        flat = jnp.concatenate([flat, jnp.zeros((padded - n,), dtype)])
    rows = padded // _LANE

    # Fixed MiB-scale row tile (multiple of 8); ragged last block handled by cdiv.
    tr = min(tile_rows, rows)
    tr = max(_SUB, (tr // _SUB) * _SUB)
    grid = (pl.cdiv(rows, tr),)

    x2d = flat.reshape(rows, _LANE)           # lane-dense view (reshape, not copy-heavy)

    out2d = pl.pallas_call(
        _silu_xai_kernel,
        out_shape=jax.ShapeDtypeStruct((rows, _LANE), dtype),
        grid_spec=pltpu.PrefetchScalarGridSpec(
            num_scalar_prefetch=0,
            grid=grid,
            in_specs=[pl.BlockSpec((tr, _LANE), lambda i: (i, 0))],
            out_specs=pl.BlockSpec((tr, _LANE), lambda i: (i, 0)),
        ),
        input_output_aliases={0: 0},          # allow in-place update when donatable
        compiler_params=pltpu.CompilerParams(
            dimension_semantics=("parallel",)),
    )(x2d)

    if padded != n:
        return out2d.reshape(-1)[:n].reshape(orig_shape)
    return out2d.reshape(orig_shape)


def _reference(x):
    out = x * ((x * jax.nn.sigmoid(x)) / (x + _CONST))
    return jnp.where(jnp.isnan(out), 0.0, out)


if __name__ == "__main__":
    key = jax.random.PRNGKey(0)

    # Primary check: NCHW-style input (no padding path, single block).
    x = jax.random.normal(key, (2, 4, 16, 16), dtype=jnp.float32)
    out = jax.block_until_ready(silu_xai(x))
    ref = _reference(x)
    assert out.shape == x.shape and out.dtype == x.dtype
    assert jnp.allclose(out, ref, atol=1e-5, rtol=1e-5)

    # Secondary check: element count not a multiple of 8*128 (pad/un-pad path).
    x2 = jax.random.normal(jax.random.PRNGKey(0), (5, 300), dtype=jnp.float32)
    out2 = jax.block_until_ready(silu_xai(x2))
    ref2 = _reference(x2)
    assert out2.shape == x2.shape and out2.dtype == x2.dtype
    assert jnp.allclose(out2, ref2, atol=1e-5, rtol=1e-5)

    print("KERNEL_OK")
</pallas_src>

<mosaic_0001>
module attributes {stable_mosaic.version = 11 : i64} {
  func.func @_silu_xai_kernel(%arg0: i32, %arg1: memref<16x128xf32, #tpu.memory_space<vmem>>, %arg2: memref<16x128xf32, #tpu.memory_space<vmem>>) attributes {dimension_semantics = [#tpu.dimension_semantics<parallel>], iteration_bounds = array<i64: 1>, scalar_prefetch = 0 : i64, scratch_operands = 0 : i64, tpu.core_type = #tpu.core_type<tc>, window_params = [{transform_indices = @transform_0, window_bounds = array<i64: 16, 128>}, {transform_indices = @transform_1, window_bounds = array<i64: 16, 128>}]} {
    %c0 = arith.constant 0 : index
    %c0_0 = arith.constant 0 : index
    %0 = vector.load %arg1[%c0, %c0_0] : memref<16x128xf32, #tpu.memory_space<vmem>>, vector<16x128xf32>
    %cst = arith.constant 0.000000e+00 : f32
    %1 = vector.broadcast %cst : f32 to vector<16x128xf32>
    %2 = arith.subf %1, %0 : vector<16x128xf32>
    %3 = math.exp %2 : vector<16x128xf32>
    %cst_1 = arith.constant 1.000000e+00 : f32
    %4 = vector.broadcast %cst_1 : f32 to vector<16x128xf32>
    %5 = arith.addf %4, %3 : vector<16x128xf32>
    %cst_2 = arith.constant 9.99999993E-9 : f32
    %6 = vector.broadcast %cst_2 : f32 to vector<16x128xf32>
    %7 = arith.addf %0, %6 : vector<16x128xf32>
    %8 = arith.mulf %5, %7 : vector<16x128xf32>
    %9 = arith.mulf %0, %0 : vector<16x128xf32>
    %10 = arith.divf %9, %8 : vector<16x128xf32>
    %11 = arith.cmpf one, %10, %10 : vector<16x128xf32>
    %cst_3 = arith.constant 0.000000e+00 : f32
    %12 = vector.broadcast %cst_3 : f32 to vector<16x128xf32>
    %13 = arith.select %11, %12, %10 : vector<16x128xi1>, vector<16x128xf32>
    %c0_4 = arith.constant 0 : index
    %c0_5 = arith.constant 0 : index
    %14 = vector.load %arg2[%c0_4, %c0_5] : memref<16x128xf32, #tpu.memory_space<vmem>>, vector<16x128xf32>
    tpu.vector_store %arg2[%c0_4, %c0_5], %13 {strides = array<i32>} : memref<16x128xf32, #tpu.memory_space<vmem>>, vector<16x128xf32>,
    return
  }
  func.func @transform_0(%arg0: i32) -> (i32, i32) {
    %c0_i32 = arith.constant 0 : i32
    %c0_i32_0 = arith.constant 0 : i32
    return %arg0, %c0_i32 : i32, i32
  }
  func.func @transform_1(%arg0: i32) -> (i32, i32) {
    %c0_i32 = arith.constant 0 : i32
    %c0_i32_0 = arith.constant 0 : i32
    return %arg0, %c0_i32 : i32, i32
  }
}

</mosaic_0001>

<llo_original>
// kernel: tpu_custom_call.1
$region0: #{tpu_custom_call.1}
  #allocation0 [shape = 'u32[]', space=smem, size = 0x4, offset = 0x4, fixed_abs, tag = 'smem constant byte address 0x4 - core index']
  #allocation1 [shape = 'u32[144,128]{1,0:T(1,128)}', space=vmem, size = 0x12000, scoped, tag = 'internal scratch']
  %s0 = inlined_call_operand.hbm [shape: f32[16,128], index: 0, kind: input, shape index: {}, may-alias: {0,1}]
  %s1 = inlined_call_operand.hbm [shape: f32[16,128], index: 1, kind: output, shape index: {}, may-alias: {0,1}]
  %s2 = sld [smem:[#allocation0]]
  $region18: #{tpu_custom_call.1} parent=0
    _
  %s4 = ssub.s32 1, %s2
  %s5 = scalar_select 0, %s4, %s2
  $region1: #{tpu_custom_call.1} parent=0
    #allocation2 [shape = 'u8[8192]{0}', space=vmem, size = 0x2000, scoped, tag = 'input window, operand 0, single buffered']
    #allocation3 [shape = 's32[1]{0}', space=sflag, size = 0x4, scoped, tag = 'scoped memory for tpu_custom_call.1']
    #allocation4 [shape = 's32[1]{0}', space=sflag, size = 0x4, scoped, tag = 'scoped memory for tpu_custom_call.1']
    #allocation5 [shape = 'u8[8192]{0}', space=vmem, size = 0x2000, scoped, tag = 'output window, operand 0, single buffered']
    %6 = vsyncpa [#allocation3], 0
    %7 = vsyncpa [#allocation4], 0
    // Predicated region
    $region2: #{tpu_custom_call.1} parent=1 // pred_check
      _
    $region3: #{tpu_custom_call.1} parent=1 // pred_check_branch
      %9 = sbr.rel (0) target = $region5
    $region4: #{tpu_custom_call.1} parent=1 // pred_region
      %s11 = ssub.s32 256, 256
      %12 = vsyncadd [#allocation3], %s11
      %s13 = sshll.u32 [#allocation2], 4
      %s14 = int_to_ptr.vmem [resolvable:$true] %s13
      %19 = dma.hbm_to_vmem [thread:$0]  %s0, 256, %s14, [#allocation3], 128, 128, 8
    $region5: #{tpu_custom_call.1} parent=1 // pred_fallthru
      _
    // Predicated region
    $region6: #{tpu_custom_call.1} parent=1 // pred_check
      _
    $region7: #{tpu_custom_call.1} parent=1 // pred_check_branch
      %21 = sbr.rel (0) target = $region9
    $region8: #{tpu_custom_call.1} parent=1 // pred_region
      %22 = dma.done [#allocation3], 256
    $region9: #{tpu_custom_call.1} parent=1 // pred_fallthru
      _
    %v23 = vld [vmem:[#allocation2] sm:$0xff]
    %v24 = vld [vmem:[#allocation2 + $0x8] sm:$0xff]
    %v25 = vsub.f32 0.0, %v23
    %v26 = vsub.f32 0.0, %v24
    %v27 = vmul.f32 %v25, 1.442695
    %v28 = vpow.pop %v27
    %v29 = vmul.f32 %v26, 1.442695
    %v30 = vpow.pop %v29
    %v31 = vadd.f32 %v28, 1.0
    %v32 = vadd.f32 %v30, 1.0
    %v33 = vadd.f32 %v23, 1e-08
    %v34 = vadd.f32 %v24, 1e-08
    %v35 = vmul.f32 %v31, %v33
    %v36 = vmul.f32 %v32, %v34
    %v37 = vmul.f32 %v23, %v23
    %v38 = vmul.f32 %v24, %v24
    %v39 = vrcp.pop %v35
    %v40 = vmul.f32 %v37, %v39
    %v41 = vrcp.pop %v36
    %v42 = vmul.f32 %v38, %v41
    %vm43 = vcmp.ne.f32.partialorder %v40, %v40
    %vm44 = vcmp.ne.f32.partialorder %v42, %v42
    %v45 = vsel %vm43, 0.0, %v40
    %v46 = vsel %vm44, 0.0, %v42
    %47 = vst [vmem:[#allocation5] sm:$0xff] %v45
    %48 = vst [vmem:[#allocation5 + $0x8] sm:$0xff] %v46
    // Predicated region
    $region10: #{tpu_custom_call.1} parent=1 // pred_check
      _
    $region11: #{tpu_custom_call.1} parent=1 // pred_check_branch
      %50 = sbr.rel (0) target = $region13
    $region12: #{tpu_custom_call.1} parent=1 // pred_region
      %s52 = ssub.s32 256, 256
      %53 = vsyncadd [#allocation4], %s52
      %s54 = sshll.u32 [#allocation5], 4
      %s55 = int_to_ptr.vmem [resolvable:$true] %s54
      %60 = dma.vmem_to_hbm [thread:$0]  %s55, 256, %s1, [#allocation4], 128, 128, 8
    $region13: #{tpu_custom_call.1} parent=1 // pred_fallthru
      _
    // Predicated region
    $region14: #{tpu_custom_call.1} parent=1 // pred_check
      _
    $region15: #{tpu_custom_call.1} parent=1 // pred_check_branch
      %62 = sbr.rel (0) target = $region17
    $region16: #{tpu_custom_call.1} parent=1 // pred_region
      %63 = dma.done [#allocation4], 256
    $region17: #{tpu_custom_call.1} parent=1 // pred_fallthru
      _
    %64 = vsyncpa [#allocation3], 1
    %65 = vsyncpa [#allocation4], 1

</llo_original>
